<compile_context>
chip_gen: v7x
topology: tpu7x:2x2x1
jax: 0.10.0
libtpu: 0.0.40
codegen_flags: <defaults>
</compile_context>

<pallas_src>
import functools

import jax
import jax.numpy as jnp
from jax import lax
from jax.experimental import pallas as pl
from jax.experimental.pallas import tpu as pltpu


def _round_up(x, m):
    return (x + m - 1) // m * m


_SINGLE_TC_KINDS = ("v5 lite", "v5e", "v6 lite", "v6e", "v2", "v3")

# Cap on the fused lane width (bpb * L) per grid step; keeps the value-built
# RHS / gate temporaries from blowing past the 64-vreg file.
_MAX_FUSED_LANES = 512


def _tensorcores_per_chip() -> int:
    """Best-effort TensorCore count visible to one Pallas program.

    v5e/v6e expose a single TensorCore per device -> fold the whole batch into
    one grid step.  v4/v5p (megacore) and v7x-class chips expose 2 -> keep a
    "parallel" batch grid so both cores are used.
    """
    try:
        kind = jax.devices()[0].device_kind.lower()
    except Exception:
        return 1
    if any(tag in kind for tag in _SINGLE_TC_KINDS):
        return 1
    return 2


def _convlstm_kernel(x_ref, h_ref, c_ref, w_ref, h_out_ref, c_out_ref, *,
                     num_features, input_chans, seq_len, filter_size,
                     batch_per_block, f_pad, ci_pad, r_pad, mxu_dtype):
    """One grid step == `batch_per_block` batch elements, ONE fused matmul.

    x_ref   : (bpb, Ci, L)   raw input slab
    h_ref   : (bpb, F,  L)   previous hidden state
    c_ref   : (bpb, F,  L)   previous cell state
    w_ref   : (4F, r_pad)    stacked conv weight + bias column, zero-padded
    h_out_ref, c_out_ref : (bpb, F, L)
    """
    F, Ci, L, K = num_features, input_chans, seq_len, filter_size
    bpb = batch_per_block
    W = bpb * L                       # fused lane width (batch along lanes)
    pad = (K - 1) // 2
    r_body = K * (f_pad + ci_pad)     # rows before the bias/zero tail

    w = w_ref[...]                                            # (4F, r_pad)

    # Batch concatenated along the lane axis (L is lane-dense, so this is just
    # placing vregs side by side) -> one matmul covers all batch elements.
    h_wide = jnp.concatenate(
        [h_ref[bi].astype(jnp.float32) for bi in range(bpb)], axis=1)  # (F,W)
    x_wide = jnp.concatenate(
        [x_ref[bi].astype(jnp.float32) for bi in range(bpb)], axis=1)  # (Ci,W)
    c_wide = jnp.concatenate(
        [c_ref[bi].astype(jnp.float32) for bi in range(bpb)], axis=1)  # (F,W)

    # Pad each source to a multiple of 8 rows so every sublane-axis concat
    # below lands on an 8-aligned offset (padding rows hit zero weight cols).
    if f_pad > F:
        h_wide = jnp.concatenate(
            [h_wide, jnp.zeros((f_pad - F, W), jnp.float32)], axis=0)
    if ci_pad > Ci:
        x_wide = jnp.concatenate(
            [x_wide, jnp.zeros((ci_pad - Ci, W), jnp.float32)], axis=0)

    # Per-segment lane index (position within each batch element's length L)
    # for zero-padding the conv boundaries.
    lane_h = lax.broadcasted_iota(jnp.int32, (f_pad, W), 1) % L
    lane_x = lax.broadcasted_iota(jnp.int32, (ci_pad, W), 1) % L

    def shifted_tap(v, s, lane_in_seg):
        # out[:, b*L + l] = v[:, b*L + (l - s)], zero where (l - s) is outside
        # [0, L).  A single lane-aligned XLU roll over the whole fused width;
        # cross-segment leakage is exactly the masked-out region.
        if s == 0:
            return v
        rolled = pltpu.roll(v, s % W, axis=1)
        if s > 0:
            return jnp.where(lane_in_seg >= s, rolled, 0.0)
        return jnp.where(lane_in_seg < L + s, rolled, 0.0)

    # Stacked im2col RHS built as a value (never round-tripped through VMEM
    # scratch): [h taps k=0..K-1 | x taps k=0..K-1 | ones(bias) row | zeros].
    rows = ([shifted_tap(h_wide, pad - k, lane_h) for k in range(K)]
            + [shifted_tap(x_wide, pad - k, lane_x) for k in range(K)])
    tail_rows = r_pad - r_body                      # >= 1; row 0 is the bias row
    row_idx = lax.broadcasted_iota(jnp.int32, (tail_rows, W), 0)
    rows.append(jnp.where(row_idx == 0, 1.0, 0.0).astype(jnp.float32))
    rhs = jnp.concatenate(rows, axis=0)             # (r_pad, W)

    # One fused MXU matmul over all K taps, both input sources, the bias and
    # the whole per-step batch.  f32 accumulate always; operands optionally
    # bf16 (v6e/v7x lever).
    acc = jnp.dot(w.astype(mxu_dtype), rhs.astype(mxu_dtype),
                  preferred_element_type=jnp.float32)          # (4F, W)

    i = jax.nn.sigmoid(acc[0 * F:1 * F])
    f = jax.nn.sigmoid(acc[1 * F:2 * F])
    o = jax.nn.sigmoid(acc[2 * F:3 * F])
    g = jnp.tanh(acc[3 * F:4 * F])

    c_next = f * c_wide + i * g
    h_next = o * jnp.tanh(c_next)

    for bi in range(bpb):                           # tiny static unroll
        h_out_ref[bi] = h_next[:, bi * L:(bi + 1) * L].astype(h_out_ref.dtype)
        c_out_ref[bi] = c_next[:, bi * L:(bi + 1) * L].astype(c_out_ref.dtype)


def conv_1d_lstm_cell(inp, hidden, c, weight, bias, *, filter_size,
                      grid_blocks=None, mxu_dtype=jnp.float32):
    """Pallas forward pass of Conv_1D_LSTM_cell.

    inp    : (B, input_chans, L)
    hidden : (B, F, L)
    c      : (B, F, L)
    weight : (4F, input_chans + F, K)   (PyTorch Conv1d layout: OIW)
    bias   : (4F,)
    returns (next_h, next_c), each (B, F, L)

    Only odd `filter_size` reproduces PyTorch's padding=(K-1)//2 'same' conv.
    `mxu_dtype=jnp.bfloat16` trades ~1e-3 accuracy for ~3x MXU throughput on
    v6e/v7x (keep f32 on v5e and for strict parity).
    """
    B, Ci, L = inp.shape
    _, F, _ = hidden.shape
    K = filter_size
    assert K % 2 == 1, "filter_size must be odd (as in the PyTorch module)"

    f_pad = _round_up(F, 8)
    ci_pad = _round_up(Ci, 8)
    r_body = K * (f_pad + ci_pad)
    r_pad = _round_up(r_body + 1, 128)      # +1 bias row; lane-dense weight

    # One-time parameter repack: stacked weight whose columns match the
    # in-kernel RHS row layout [h taps | x taps | bias row | zero pad].
    wh = [jnp.pad(weight[:, Ci:, k], ((0, 0), (0, f_pad - F)))
          for k in range(K)]
    wx = [jnp.pad(weight[:, :Ci, k], ((0, 0), (0, ci_pad - Ci)))
          for k in range(K)]
    w_stk = jnp.concatenate(wh + wx + [bias.reshape(4 * F, 1)], axis=1)
    w_stk = jnp.pad(w_stk, ((0, 0), (0, r_pad - (r_body + 1))))
    w_stk = w_stk.astype(jnp.float32)                 # (4F, r_pad)

    if grid_blocks is None:
        max_bpb = max(1, _MAX_FUSED_LANES // max(L, 1))
        grid_blocks = max(_tensorcores_per_chip(), -(-B // max_bpb))
    grid_blocks = max(1, min(grid_blocks, B))
    while B % grid_blocks:
        grid_blocks += 1
    bpb = B // grid_blocks

    kernel = functools.partial(
        _convlstm_kernel, num_features=F, input_chans=Ci, seq_len=L,
        filter_size=K, batch_per_block=bpb, f_pad=f_pad, ci_pad=ci_pad,
        r_pad=r_pad, mxu_dtype=mxu_dtype)

    out_shapes = (
        jax.ShapeDtypeStruct((B, F, L), inp.dtype),   # next_h
        jax.ShapeDtypeStruct((B, F, L), inp.dtype),   # next_c
    )

    next_h, next_c = pl.pallas_call(
        kernel,
        out_shape=out_shapes,
        grid=(grid_blocks,),
        in_specs=[
            pl.BlockSpec((bpb, Ci, L), lambda g: (g, 0, 0)),
            pl.BlockSpec((bpb, F, L), lambda g: (g, 0, 0)),
            pl.BlockSpec((bpb, F, L), lambda g: (g, 0, 0)),
            pl.BlockSpec((4 * F, r_pad), lambda g: (0, 0)),
        ],
        out_specs=[
            pl.BlockSpec((bpb, F, L), lambda g: (g, 0, 0)),
            pl.BlockSpec((bpb, F, L), lambda g: (g, 0, 0)),
        ],
        compiler_params=pltpu.CompilerParams(
            dimension_semantics=("parallel",)),
    )(inp, hidden, c, w_stk)

    return next_h, next_c


def _reference(inp, hidden, c, weight, bias):
    """Pure-JAX reference matching PyTorch semantics exactly (f32 conv)."""
    K = weight.shape[-1]
    pad = (K - 1) // 2
    combined = jnp.concatenate([inp, hidden], axis=1)
    A = lax.conv_general_dilated(
        combined, weight, window_strides=(1,),
        padding=[(pad, pad)],
        dimension_numbers=("NCH", "OIH", "NCH"),
        precision=lax.Precision.HIGHEST,
    ) + bias.reshape(1, -1, 1)
    ai, af, ao, ag = jnp.split(A, 4, axis=1)
    i = jax.nn.sigmoid(ai)
    f = jax.nn.sigmoid(af)
    o = jax.nn.sigmoid(ao)
    g = jnp.tanh(ag)
    next_c = f * c + i * g
    next_h = o * jnp.tanh(next_c)
    return next_h, next_c


if __name__ == "__main__":
    # Module hyperparameters (shape == spatial length of the states).
    shape = 128          # L
    input_chans = 4
    filter_size = 3
    num_features = 16    # F
    batch = 2

    key = jax.random.PRNGKey(0)
    k_x, k_h, k_c, k_w, k_b = jax.random.split(key, 5)

    Cin = input_chans + num_features
    # Deterministic "synthetic checkpoint" params (PyTorch Conv1d fan-in scale).
    bound = 1.0 / (Cin * filter_size) ** 0.5
    weight = jax.random.uniform(k_w, (4 * num_features, Cin, filter_size),
                                jnp.float32, -bound, bound)
    bias = jax.random.uniform(k_b, (4 * num_features,), jnp.float32,
                              -bound, bound)

    x = jax.random.normal(k_x, (batch, input_chans, shape), jnp.float32)
    h0 = jax.random.normal(k_h, (batch, num_features, shape), jnp.float32)
    c0 = jax.random.normal(k_c, (batch, num_features, shape), jnp.float32)

    fwd = jax.jit(functools.partial(conv_1d_lstm_cell,
                                    filter_size=filter_size))
    next_h, next_c = fwd(x, h0, c0, weight, bias)
    jax.block_until_ready((next_h, next_c))

    ref_h, ref_c = _reference(x, h0, c0, weight, bias)
    assert jnp.allclose(next_h, ref_h, atol=1e-5, rtol=1e-5)
    assert jnp.allclose(next_c, ref_c, atol=1e-5, rtol=1e-5)

    print("KERNEL_OK")
</pallas_src>

<mosaic_0001>
module attributes {stable_mosaic.version = 11 : i64} {
  func.func @_convlstm_kernel(%arg0: i32, %arg1: memref<1x4x128xf32, #tpu.memory_space<vmem>>, %arg2: memref<1x16x128xf32, #tpu.memory_space<vmem>>, %arg3: memref<1x16x128xf32, #tpu.memory_space<vmem>>, %arg4: memref<64x128xf32, #tpu.memory_space<vmem>>, %arg5: memref<1x16x128xf32, #tpu.memory_space<vmem>>, %arg6: memref<1x16x128xf32, #tpu.memory_space<vmem>>) attributes {dimension_semantics = [#tpu.dimension_semantics<parallel>], iteration_bounds = array<i64: 2>, scalar_prefetch = 0 : i64, scratch_operands = 0 : i64, tpu.core_type = #tpu.core_type<tc>, window_params = [{transform_indices = @transform_0, window_bounds = array<i64: 1, 4, 128>}, {transform_indices = @transform_1, window_bounds = array<i64: 1, 16, 128>}, {transform_indices = @transform_2, window_bounds = array<i64: 1, 16, 128>}, {pipeline_mode = #tpu.pipeline_mode<synchronous>, transform_indices = @transform_3, window_bounds = array<i64: 64, 128>}, {transform_indices = @transform_4, window_bounds = array<i64: 1, 16, 128>}, {transform_indices = @transform_5, window_bounds = array<i64: 1, 16, 128>}]} {
    %c0 = arith.constant 0 : index
    %c0_0 = arith.constant 0 : index
    %0 = vector.load %arg4[%c0, %c0_0] : memref<64x128xf32, #tpu.memory_space<vmem>>, vector<64x128xf32>
    %c0_1 = arith.constant 0 : index
    %c0_2 = arith.constant 0 : index
    %c0_3 = arith.constant 0 : index
    %1 = vector.load %arg2[%c0_1, %c0_2, %c0_3] : memref<1x16x128xf32, #tpu.memory_space<vmem>>, vector<1x16x128xf32>
    %2 = vector.shape_cast %1 : vector<1x16x128xf32> to vector<16x128xf32>
    %c0_4 = arith.constant 0 : index
    %c0_5 = arith.constant 0 : index
    %c0_6 = arith.constant 0 : index
    %3 = vector.load %arg1[%c0_4, %c0_5, %c0_6] : memref<1x4x128xf32, #tpu.memory_space<vmem>>, vector<1x4x128xf32>
    %4 = vector.shape_cast %3 : vector<1x4x128xf32> to vector<4x128xf32>
    %c0_7 = arith.constant 0 : index
    %c0_8 = arith.constant 0 : index
    %c0_9 = arith.constant 0 : index
    %5 = vector.load %arg3[%c0_7, %c0_8, %c0_9] : memref<1x16x128xf32, #tpu.memory_space<vmem>>, vector<1x16x128xf32>
    %6 = vector.shape_cast %5 : vector<1x16x128xf32> to vector<16x128xf32>
    %cst = arith.constant 0.000000e+00 : f32
    %7 = vector.broadcast %cst : f32 to vector<4x128xf32>
    %8 = tpu.concatenate %4, %7 in 0 : vector<4x128xf32>, vector<4x128xf32> -> vector<8x128xf32>
    %9 = tpu.iota {dimensions = array<i32: 1>} : vector<16x128xi32>
    %c128_i32 = arith.constant 128 : i32
    %c0_i32 = arith.constant 0 : i32
    %10 = arith.cmpi eq, %c128_i32, %c0_i32 : i32
    %c1_i32 = arith.constant 1 : i32
    %11 = arith.select %10, %c1_i32, %c128_i32 : i32
    %12 = vector.broadcast %11 : i32 to vector<16x128xi32>
    %13 = arith.remsi %9, %12 : vector<16x128xi32>
    %c0_i32_10 = arith.constant 0 : i32
    %14 = vector.broadcast %c0_i32_10 : i32 to vector<16x128xi32>
    %15 = arith.cmpi ne, %13, %14 : vector<16x128xi32>
    %c0_i32_11 = arith.constant 0 : i32
    %16 = vector.broadcast %c0_i32_11 : i32 to vector<16x128xi32>
    %17 = arith.cmpi slt, %13, %16 : vector<16x128xi32>
    %c0_i32_12 = arith.constant 0 : i32
    %18 = arith.cmpi slt, %11, %c0_i32_12 : i32
    %19 = vector.broadcast %18 : i1 to vector<16x128xi1>
    %20 = vector.broadcast %19 : vector<16x128xi1> to vector<16x128xi1>
    %21 = arith.xori %17, %20 : vector<16x128xi1>
    %22 = arith.andi %21, %15 : vector<16x128xi1>
    %23 = vector.broadcast %11 : i32 to vector<16x128xi32>
    %24 = arith.addi %13, %23 : vector<16x128xi32>
    %25 = arith.select %22, %24, %13 : vector<16x128xi1>, vector<16x128xi32>
    %26 = tpu.iota {dimensions = array<i32: 1>} : vector<8x128xi32>
    %c128_i32_13 = arith.constant 128 : i32
    %c0_i32_14 = arith.constant 0 : i32
    %27 = arith.cmpi eq, %c128_i32_13, %c0_i32_14 : i32
    %c1_i32_15 = arith.constant 1 : i32
    %28 = arith.select %27, %c1_i32_15, %c128_i32_13 : i32
    %29 = vector.broadcast %28 : i32 to vector<8x128xi32>
    %30 = arith.remsi %26, %29 : vector<8x128xi32>
    %c0_i32_16 = arith.constant 0 : i32
    %31 = vector.broadcast %c0_i32_16 : i32 to vector<8x128xi32>
    %32 = arith.cmpi ne, %30, %31 : vector<8x128xi32>
    %c0_i32_17 = arith.constant 0 : i32
    %33 = vector.broadcast %c0_i32_17 : i32 to vector<8x128xi32>
    %34 = arith.cmpi slt, %30, %33 : vector<8x128xi32>
    %c0_i32_18 = arith.constant 0 : i32
    %35 = arith.cmpi slt, %28, %c0_i32_18 : i32
    %36 = vector.broadcast %35 : i1 to vector<8x128xi1>
    %37 = vector.broadcast %36 : vector<8x128xi1> to vector<8x128xi1>
    %38 = arith.xori %34, %37 : vector<8x128xi1>
    %39 = arith.andi %38, %32 : vector<8x128xi1>
    %40 = vector.broadcast %28 : i32 to vector<8x128xi32>
    %41 = arith.addi %30, %40 : vector<8x128xi32>
    %42 = arith.select %39, %41, %30 : vector<8x128xi1>, vector<8x128xi32>
    %c1_i32_19 = arith.constant 1 : i32
    %43 = tpu.dynamic_rotate %2 by %c1_i32_19 dim 1 : vector<16x128xf32>, i32 -> vector<16x128xf32>
    %c1_i32_20 = arith.constant 1 : i32
    %44 = vector.broadcast %c1_i32_20 : i32 to vector<16x128xi32>
    %45 = arith.cmpi sge, %25, %44 : vector<16x128xi32>
    %cst_21 = arith.constant 0.000000e+00 : f32
    %46 = vector.broadcast %cst_21 : f32 to vector<16x128xf32>
    %47 = arith.select %45, %43, %46 : vector<16x128xi1>, vector<16x128xf32>
    %c127_i32 = arith.constant 127 : i32
    %48 = tpu.dynamic_rotate %2 by %c127_i32 dim 1 : vector<16x128xf32>, i32 -> vector<16x128xf32>
    %c127_i32_22 = arith.constant 127 : i32
    %49 = vector.broadcast %c127_i32_22 : i32 to vector<16x128xi32>
    %50 = arith.cmpi slt, %25, %49 : vector<16x128xi32>
    %cst_23 = arith.constant 0.000000e+00 : f32
    %51 = vector.broadcast %cst_23 : f32 to vector<16x128xf32>
    %52 = arith.select %50, %48, %51 : vector<16x128xi1>, vector<16x128xf32>
    %c1_i32_24 = arith.constant 1 : i32
    %53 = tpu.dynamic_rotate %8 by %c1_i32_24 dim 1 : vector<8x128xf32>, i32 -> vector<8x128xf32>
    %c1_i32_25 = arith.constant 1 : i32
    %54 = vector.broadcast %c1_i32_25 : i32 to vector<8x128xi32>
    %55 = arith.cmpi sge, %42, %54 : vector<8x128xi32>
    %cst_26 = arith.constant 0.000000e+00 : f32
    %56 = vector.broadcast %cst_26 : f32 to vector<8x128xf32>
    %57 = arith.select %55, %53, %56 : vector<8x128xi1>, vector<8x128xf32>
    %c127_i32_27 = arith.constant 127 : i32
    %58 = tpu.dynamic_rotate %8 by %c127_i32_27 dim 1 : vector<8x128xf32>, i32 -> vector<8x128xf32>
    %c127_i32_28 = arith.constant 127 : i32
    %59 = vector.broadcast %c127_i32_28 : i32 to vector<8x128xi32>
    %60 = arith.cmpi slt, %42, %59 : vector<8x128xi32>
    %cst_29 = arith.constant 0.000000e+00 : f32
    %61 = vector.broadcast %cst_29 : f32 to vector<8x128xf32>
    %62 = arith.select %60, %58, %61 : vector<8x128xi1>, vector<8x128xf32>
    %63 = tpu.iota {dimensions = array<i32: 0>} : vector<56x128xi32>
    %c0_i32_30 = arith.constant 0 : i32
    %64 = vector.broadcast %c0_i32_30 : i32 to vector<56x128xi32>
    %65 = arith.cmpi eq, %63, %64 : vector<56x128xi32>
    %cst_31 = arith.constant 1.000000e+00 : f32
    %cst_32 = arith.constant 0.000000e+00 : f32
    %66 = vector.broadcast %cst_31 : f32 to vector<56x128xf32>
    %67 = vector.broadcast %cst_32 : f32 to vector<56x128xf32>
    %68 = arith.select %65, %66, %67 : vector<56x128xi1>, vector<56x128xf32>
    %69 = tpu.concatenate %47, %2, %52, %57, %8, %62, %68 in 0 : vector<16x128xf32>, vector<16x128xf32>, vector<16x128xf32>, vector<8x128xf32>, vector<8x128xf32>, vector<8x128xf32>, vector<56x128xf32> -> vector<128x128xf32>
    %cst_33 = arith.constant dense<0.000000e+00> : vector<64x128xf32>
    %70 = tpu.matmul %0, %69, %cst_33 {dimension_numbers = #tpu.dot_dimension_numbers<[1], [0], [0], [1], [0, 0, 1, 1], [], []>} : vector<64x128xf32>, vector<128x128xf32>, vector<64x128xf32> -> vector<64x128xf32>
    %71 = vector.extract_strided_slice %70 {offsets = [0, 0], sizes = [16, 128], strides = [1, 1]} : vector<64x128xf32> to vector<16x128xf32>
    %72 = arith.negf %71 : vector<16x128xf32>
    %73 = math.exp %72 : vector<16x128xf32>
    %cst_34 = arith.constant 1.000000e+00 : f32
    %74 = vector.broadcast %cst_34 : f32 to vector<16x128xf32>
    %75 = arith.addf %74, %73 : vector<16x128xf32>
    %76 = arith.divf %74, %75 : vector<16x128xf32>
    %77 = vector.extract_strided_slice %70 {offsets = [16, 0], sizes = [16, 128], strides = [1, 1]} : vector<64x128xf32> to vector<16x128xf32>
    %78 = arith.negf %77 : vector<16x128xf32>
    %79 = math.exp %78 : vector<16x128xf32>
    %cst_35 = arith.constant 1.000000e+00 : f32
    %80 = vector.broadcast %cst_35 : f32 to vector<16x128xf32>
    %81 = arith.addf %80, %79 : vector<16x128xf32>
    %82 = arith.divf %80, %81 : vector<16x128xf32>
    %83 = vector.extract_strided_slice %70 {offsets = [32, 0], sizes = [16, 128], strides = [1, 1]} : vector<64x128xf32> to vector<16x128xf32>
    %84 = arith.negf %83 : vector<16x128xf32>
    %85 = math.exp %84 : vector<16x128xf32>
    %cst_36 = arith.constant 1.000000e+00 : f32
    %86 = vector.broadcast %cst_36 : f32 to vector<16x128xf32>
    %87 = arith.addf %86, %85 : vector<16x128xf32>
    %88 = arith.divf %86, %87 : vector<16x128xf32>
    %89 = vector.extract_strided_slice %70 {offsets = [48, 0], sizes = [16, 128], strides = [1, 1]} : vector<64x128xf32> to vector<16x128xf32>
    %90 = math.tanh %89 : vector<16x128xf32>
    %91 = arith.mulf %82, %6 : vector<16x128xf32>
    %92 = arith.mulf %76, %90 : vector<16x128xf32>
    %93 = arith.addf %91, %92 : vector<16x128xf32>
    %94 = math.tanh %93 : vector<16x128xf32>
    %95 = arith.mulf %88, %94 : vector<16x128xf32>
    %c0_37 = arith.constant 0 : index
    %c0_38 = arith.constant 0 : index
    %c0_39 = arith.constant 0 : index
    %96 = vector.load %arg5[%c0_37, %c0_38, %c0_39] : memref<1x16x128xf32, #tpu.memory_space<vmem>>, vector<1x16x128xf32>
    %97 = vector.shape_cast %96 : vector<1x16x128xf32> to vector<16x128xf32>
    %98 = vector.shape_cast %95 : vector<16x128xf32> to vector<1x16x128xf32>
    tpu.vector_store %arg5[%c0_37, %c0_38, %c0_39], %98 {strides = array<i32>} : memref<1x16x128xf32, #tpu.memory_space<vmem>>, vector<1x16x128xf32>,
    %c0_40 = arith.constant 0 : index
    %c0_41 = arith.constant 0 : index
    %c0_42 = arith.constant 0 : index
    %99 = vector.load %arg6[%c0_40, %c0_41, %c0_42] : memref<1x16x128xf32, #tpu.memory_space<vmem>>, vector<1x16x128xf32>
    %100 = vector.shape_cast %99 : vector<1x16x128xf32> to vector<16x128xf32>
    %101 = vector.shape_cast %93 : vector<16x128xf32> to vector<1x16x128xf32>
    tpu.vector_store %arg6[%c0_40, %c0_41, %c0_42], %101 {strides = array<i32>} : memref<1x16x128xf32, #tpu.memory_space<vmem>>, vector<1x16x128xf32>,
    return
  }
  func.func @transform_0(%arg0: i32) -> (i32, i32, i32) {
    %c0_i32 = arith.constant 0 : i32
    %c0_i32_0 = arith.constant 0 : i32
    %c0_i32_1 = arith.constant 0 : i32
    return %arg0, %c0_i32, %c0_i32_0 : i32, i32, i32
  }
  func.func @transform_1(%arg0: i32) -> (i32, i32, i32) {
    %c0_i32 = arith.constant 0 : i32
    %c0_i32_0 = arith.constant 0 : i32
    %c0_i32_1 = arith.constant 0 : i32
    return %arg0, %c0_i32, %c0_i32_0 : i32, i32, i32
  }
  func.func @transform_2(%arg0: i32) -> (i32, i32, i32) {
    %c0_i32 = arith.constant 0 : i32
    %c0_i32_0 = arith.constant 0 : i32
    %c0_i32_1 = arith.constant 0 : i32
    return %arg0, %c0_i32, %c0_i32_0 : i32, i32, i32
  }
  func.func @transform_3(%arg0: i32) -> (i32, i32) {
    %c0_i32 = arith.constant 0 : i32
    %c0_i32_0 = arith.constant 0 : i32
    %c0_i32_1 = arith.constant 0 : i32
    return %c0_i32, %c0_i32_0 : i32, i32
  }
  func.func @transform_4(%arg0: i32) -> (i32, i32, i32) {
    %c0_i32 = arith.constant 0 : i32
    %c0_i32_0 = arith.constant 0 : i32
    %c0_i32_1 = arith.constant 0 : i32
    return %arg0, %c0_i32, %c0_i32_0 : i32, i32, i32
  }
  func.func @transform_5(%arg0: i32) -> (i32, i32, i32) {
    %c0_i32 = arith.constant 0 : i32
    %c0_i32_0 = arith.constant 0 : i32
    %c0_i32_1 = arith.constant 0 : i32
    return %arg0, %c0_i32, %c0_i32_0 : i32, i32, i32
  }
}

</mosaic_0001>

<llo_original>
// kernel: conv_1d_lstm_cell.1
$region0: #{conv_1d_lstm_cell.1}
  #allocation0 [shape = 'u32[]', space=smem, size = 0x4, offset = 0x4, fixed_abs, tag = 'smem constant byte address 0x4 - core index']
  #allocation1 [shape = 'u32[144,128]{1,0:T(1,128)}', space=vmem, size = 0x12000, scoped, tag = 'internal scratch']
  %s0 = inlined_call_operand.vmem [shape: f32[2,4,128], index: 0, kind: input, shape index: {}]
  %s1 = inlined_call_operand.vmem [shape: f32[2,16,128], index: 1, kind: input, shape index: {}]
  %s2 = inlined_call_operand.vmem [shape: f32[2,16,128], index: 2, kind: input, shape index: {}]
  %s3 = inlined_call_operand.vmem [shape: f32[64,128], index: 3, kind: input, shape index: {}]
  %s4 = inlined_call_operand.hbm [shape: f32[2,16,128], index: 4, kind: output, shape index: {0}]
  %s5 = inlined_call_operand.hbm [shape: f32[2,16,128], index: 5, kind: output, shape index: {1}]
  %6 = xla_tuple %s4, %s5
  %s7 = sld [smem:[#allocation0]]
  $region57: #{conv_1d_lstm_cell.1} parent=0
    _
  %s9 = ssub.s32 1, %s7
  %s10 = scalar_select 0, %s9, %s7
  $region1: #{conv_1d_lstm_cell.1} parent=0
    #allocation2 [shape = 'u8[16384]{0}', space=vmem, size = 0x4000, scoped, tag = 'output window, operand 0']
    #allocation3 [shape = 's32[2]{0}', space=sflag, size = 0x8, scoped, tag = 'scoped memory for conv_1d_lstm_cell.1']
    #allocation4 [shape = 'u8[16384]{0}', space=vmem, size = 0x4000, scoped, tag = 'output window, operand 1']
    #allocation5 [shape = 's32[2]{0}', space=sflag, size = 0x8, scoped, tag = 'scoped memory for conv_1d_lstm_cell.1']
    %11 = vsyncpa [#allocation3], 0
    %s12 = scalar_lea.sflag [#allocation3], 1
    %13 = vsyncpa %s12, 0
    %14 = vsyncpa [#allocation5], 0
    %s15 = scalar_lea.sflag [#allocation5], 1
    %16 = vsyncpa %s15, 0
    loop: start=0, step=1, limit=4
    $region2: #{conv_1d_lstm_cell.1} parent=1 // loop_pre_header
      _
    $region3: #{conv_1d_lstm_cell.1} parent=1 // loop_header
      %s18 = sphi 0, %s22
      %p19 = scmp.ge.s32.totalorder %s18, 4
      %s28 = sphi 0, %s30
      %s31 = sphi 0, %s28
      %s32 = sphi 0, %s31
      %s48 = sphi 0, %s32
      %s54 = sphi 0, %s56
      %s57 = sphi 0, %s54
      %s58 = sphi 0, %s57
      %s74 = sphi 0, %s58
      %s80 = sphi 0, %s82
      %s83 = sphi 0, %s80
      %s84 = sphi 0, %s83
      %s100 = sphi 0, %s84
      %s104 = sphi 0, %s104
      %s106 = sphi 0, %s104
      %s107 = sphi 0, %s106
      %s121 = sphi 0, %s107
      %s127 = sphi 0, %s129
      %s130 = sphi 0, %s127
      %s131 = sphi 0, %s130
      %s147 = sphi 0, %s131
      %s153 = sphi 0, %s155
      %s156 = sphi 0, %s153
      %s157 = sphi 0, %s156
      %s173 = sphi 0, %s157
    $region4: #{conv_1d_lstm_cell.1} parent=1 // loop_header_branch
      %21 = sbr.rel (%p19) target = $region8
    $region5: #{conv_1d_lstm_cell.1} parent=1 // loop_body
      %s23 = ssub.s32 %s18, 1
      %s24 = ssub.s32 %s18, 2
      %s25 = sadd.s32 %s18, 1
      %s26 = ssub.s32 %s18, %s25
      %p27 = scmp.eq.s32.totalorder %s26, 0
      %s29 = sadd.s32 %s28, 1
      %s30 = scalar_select %p27, %s28, %s29
      %p33 = pneg %p27
      %p34 = scmp.eq.s32.totalorder %s18, 1
      %p35 = por %p33, %p34
      %p36 = scmp.ne.s32.totalorder %s28, %s31
      %p37 = scmp.eq.s32.totalorder %s18, 0
      %p38 = por %p36, %p37
      %p39 = scmp.ne.s32.totalorder %s28, %s31
      %p40 = scmp.eq.s32.totalorder %s23, 1
      %p41 = por %p39, %p40
      %p42 = scmp.ne.s32.totalorder %s31, %s32
      %p43 = scmp.eq.s32.totalorder %s23, 0
      %p44 = por %p42, %p43
      %p45 = scmp.ne.s32.totalorder %s31, %s32
      %p46 = scmp.eq.s32.totalorder %s24, 1
      %p47 = por %p45, %p46
      %p49 = scmp.ne.s32.totalorder %s32, %s48
      %p50 = scmp.eq.s32.totalorder %s24, 0
      %p51 = por %p49, %p50
      %s52 = ssub.s32 %s18, %s25
      %p53 = scmp.eq.s32.totalorder %s52, 0
      %s55 = sadd.s32 %s54, 1
      %s56 = scalar_select %p53, %s54, %s55
      %p59 = pneg %p53
      %p60 = scmp.eq.s32.totalorder %s18, 1
      %p61 = por %p59, %p60
      %p62 = scmp.ne.s32.totalorder %s54, %s57
      %p63 = scmp.eq.s32.totalorder %s18, 0
      %p64 = por %p62, %p63
      %p65 = scmp.ne.s32.totalorder %s54, %s57
      %p66 = scmp.eq.s32.totalorder %s23, 1
      %p67 = por %p65, %p66
      %p68 = scmp.ne.s32.totalorder %s57, %s58
      %p69 = scmp.eq.s32.totalorder %s23, 0
      %p70 = por %p68, %p69
      %p71 = scmp.ne.s32.totalorder %s57, %s58
      %p72 = scmp.eq.s32.totalorder %s24, 1
      %p73 = por %p71, %p72
      %p75 = scmp.ne.s32.totalorder %s58, %s74
      %p76 = scmp.eq.s32.totalorder %s24, 0
      %p77 = por %p75, %p76
      %s78 = ssub.s32 %s18, %s25
      %p79 = scmp.eq.s32.totalorder %s78, 0
      %s81 = sadd.s32 %s80, 1
      %s82 = scalar_select %p79, %s80, %s81
      %p85 = pneg %p79
      %p86 = scmp.eq.s32.totalorder %s18, 1
      %p87 = por %p85, %p86
      %p88 = scmp.ne.s32.totalorder %s80, %s83
      %p89 = scmp.eq.s32.totalorder %s18, 0
      %p90 = por %p88, %p89
      %p91 = scmp.ne.s32.totalorder %s80, %s83
      %p92 = scmp.eq.s32.totalorder %s23, 1
      %p93 = por %p91, %p92
      %p94 = scmp.ne.s32.totalorder %s83, %s84
      %p95 = scmp.eq.s32.totalorder %s23, 0
      %p96 = por %p94, %p95
      %p97 = scmp.ne.s32.totalorder %s83, %s84
      %p98 = scmp.eq.s32.totalorder %s24, 1
      %p99 = por %p97, %p98
      %p101 = scmp.ne.s32.totalorder %s84, %s100
      %p102 = scmp.eq.s32.totalorder %s24, 0
      %p103 = por %p101, %p102
      %s105 = sadd.s32 %s104, 1
      %p108 = scmp.eq.s32.totalorder %s18, 1
      %p109 = scmp.ne.s32.totalorder %s104, %s106
      %p110 = scmp.eq.s32.totalorder %s18, 0
      %p111 = por %p109, %p110
      %p112 = scmp.ne.s32.totalorder %s104, %s106
      %p113 = scmp.eq.s32.totalorder %s23, 1
      %p114 = por %p112, %p113
      %p115 = scmp.ne.s32.totalorder %s106, %s107
      %p116 = scmp.eq.s32.totalorder %s23, 0
      %p117 = por %p115, %p116
      %p118 = scmp.ne.s32.totalorder %s106, %s107
      %p119 = scmp.eq.s32.totalorder %s24, 1
      %p120 = por %p118, %p119
      %p122 = scmp.ne.s32.totalorder %s107, %s121
      %p123 = scmp.eq.s32.totalorder %s24, 0
      %p124 = por %p122, %p123
      %s125 = ssub.s32 %s18, %s25
      %p126 = scmp.eq.s32.totalorder %s125, 0
      %s128 = sadd.s32 %s127, 1
      %s129 = scalar_select %p126, %s127, %s128
      %p132 = pneg %p126
      %p133 = scmp.eq.s32.totalorder %s18, 1
      %p134 = por %p132, %p133
      %p135 = scmp.ne.s32.totalorder %s127, %s130
      %p136 = scmp.eq.s32.totalorder %s18, 0
      %p137 = por %p135, %p136
      %p138 = scmp.ne.s32.totalorder %s127, %s130
      %p139 = scmp.eq.s32.totalorder %s23, 1
      %p140 = por %p138, %p139
      %p141 = scmp.ne.s32.totalorder %s130, %s131
      %p142 = scmp.eq.s32.totalorder %s23, 0
      %p143 = por %p141, %p142
      %p144 = scmp.ne.s32.totalorder %s130, %s131
      %p145 = scmp.eq.s32.totalorder %s24, 1
      %p146 = por %p144, %p145
      %p148 = scmp.ne.s32.totalorder %s131, %s147
      %p149 = scmp.eq.s32.totalorder %s24, 0
      %p150 = por %p148, %p149
      %s151 = ssub.s32 %s18, %s25
      %p152 = scmp.eq.s32.totalorder %s151, 0
      %s154 = sadd.s32 %s153, 1
      %s155 = scalar_select %p152, %s153, %s154
      %p158 = pneg %p152
      %p159 = scmp.eq.s32.totalorder %s18, 1
      %p160 = por %p158, %p159
      %p161 = scmp.ne.s32.totalorder %s153, %s156
      %p162 = scmp.eq.s32.totalorder %s18, 0
      %p163 = por %p161, %p162
      %p164 = scmp.ne.s32.totalorder %s153, %s156
      %p165 = scmp.eq.s32.totalorder %s23, 1
      %p166 = por %p164, %p165
      %p167 = scmp.ne.s32.totalorder %s156, %s157
      %p168 = scmp.eq.s32.totalorder %s23, 0
      %p169 = por %p167, %p168
      %p170 = scmp.ne.s32.totalorder %s156, %s157
      %p171 = scmp.eq.s32.totalorder %s24, 1
      %p172 = por %p170, %p171
      %p174 = scmp.ne.s32.totalorder %s157, %s173
      %p175 = scmp.eq.s32.totalorder %s24, 0
      %p176 = por %p174, %p175
      %p177 = scmp.le.s32.totalorder 1, %s18
      %p178 = scmp.lt.s32.totalorder %s18, 3
      %p179 = pnand %p177, %p178
      %p180 = pneg %p179
      // Predicated region
      $region9: #{conv_1d_lstm_cell.1} parent=5 // pred_check
        _
      $region10: #{conv_1d_lstm_cell.1} parent=5 // pred_check_branch
        %182 = sbr.rel (%p179) target = $region12
      $region11: #{conv_1d_lstm_cell.1} parent=5 // pred_region
        %s183 = ssub.s32 %s18, 1
        // Predicated region
        $region13: #{conv_1d_lstm_cell.1} parent=11 // pred_check
          %p184 = pneg %p117
        $region14: #{conv_1d_lstm_cell.1} parent=11 // pred_check_branch
          %186 = sbr.rel (%p184) target = $region16
        $region15: #{conv_1d_lstm_cell.1} parent=11 // pred_region
          _
        $region16: #{conv_1d_lstm_cell.1} parent=11 // pred_fallthru
          _
      $region12: #{conv_1d_lstm_cell.1} parent=5 // pred_fallthru
        _
      %p187 = scmp.lt.s32.totalorder %s18, 2
      // Predicated region
      $region17: #{conv_1d_lstm_cell.1} parent=5 // pred_check
        %p188 = pneg %p187
      $region18: #{conv_1d_lstm_cell.1} parent=5 // pred_check_branch
        %190 = sbr.rel (%p188) target = $region20
      $region19: #{conv_1d_lstm_cell.1} parent=5 // pred_region
        // Predicated region
        $region21: #{conv_1d_lstm_cell.1} parent=19 // pred_check
          %p191 = pneg %p38
        $region22: #{conv_1d_lstm_cell.1} parent=19 // pred_check_branch
          %193 = sbr.rel (%p191) target = $region24
        $region23: #{conv_1d_lstm_cell.1} parent=19 // pred_region
          %p194 = scmp.lt.s32.totalorder %s18, 1
          %s195 = scalar_select %p194, %s18, 1
          %s196 = smul.addr %s195, 4
          %s197 = scalar_lea.vmem %s0, %s196
        $region24: #{conv_1d_lstm_cell.1} parent=19 // pred_fallthru
          _
        // Predicated region
        $region25: #{conv_1d_lstm_cell.1} parent=19 // pred_check
          %p198 = pneg %p64
        $region26: #{conv_1d_lstm_cell.1} parent=19 // pred_check_branch
          %200 = sbr.rel (%p198) target = $region28
        $region27: #{conv_1d_lstm_cell.1} parent=19 // pred_region
          %p201 = scmp.lt.s32.totalorder %s18, 1
          %s202 = scalar_select %p201, %s18, 1
          %s203 = smul.addr %s202, 2
          %s204 = smul.addr %s203, 8
          %s205 = scalar_lea.vmem %s1, %s204
        $region28: #{conv_1d_lstm_cell.1} parent=19 // pred_fallthru
          _
        // Predicated region
        $region29: #{conv_1d_lstm_cell.1} parent=19 // pred_check
          %p206 = pneg %p90
        $region30: #{conv_1d_lstm_cell.1} parent=19 // pred_check_branch
          %208 = sbr.rel (%p206) target = $region32
        $region31: #{conv_1d_lstm_cell.1} parent=19 // pred_region
          %p209 = scmp.lt.s32.totalorder %s18, 1
          %s210 = scalar_select %p209, %s18, 1
          %s211 = smul.addr %s210, 2
          %s212 = smul.addr %s211, 8
          %s213 = scalar_lea.vmem %s2, %s212
        $region32: #{conv_1d_lstm_cell.1} parent=19 // pred_fallthru
          _
      $region20: #{conv_1d_lstm_cell.1} parent=5 // pred_fallthru
        _
      %p214 = scmp.le.s32.totalorder 1, %s18
      %p215 = scmp.lt.s32.totalorder %s18, 3
      %p216 = pnand %p214, %p215
      %p217 = pneg %p216
      // Predicated region
      $region33: #{conv_1d_lstm_cell.1} parent=5 // pred_check
        _
      $region34: #{conv_1d_lstm_cell.1} parent=5 // pred_check_branch
        %219 = sbr.rel (%p216) target = $region36
      $region35: #{conv_1d_lstm_cell.1} parent=5 // pred_region
        %s220 = ssub.s32 %s18, 1
        %p221 = scmp.lt.s32.totalorder %s23, 1
        %s222 = scalar_select %p221, %s23, 1
        %s223 = smul.addr %s222, 4
        %s224 = scalar_lea.vmem %s0, %s223
        %p225 = pneg %p44
        %p226 = pneg %p41
        %p227 = scmp.lt.s32.totalorder %s23, 1
        %s228 = scalar_select %p227, %s23, 1
        %s229 = smul.addr %s228, 2
        %s230 = smul.addr %s229, 8
        %s231 = scalar_lea.vmem %s1, %s230
        %p232 = pneg %p70
        %p233 = pneg %p67
        %p234 = scmp.lt.s32.totalorder %s23, 1
        %s235 = scalar_select %p234, %s23, 1
        %s236 = smul.addr %s235, 2
        %s237 = smul.addr %s236, 8
        %s238 = scalar_lea.vmem %s2, %s237
        %p239 = pneg %p96
        %p240 = pneg %p93
        %p241 = pneg %p117
        %p242 = pneg %p114
        %p243 = pneg %p143
        %p244 = pneg %p140
        %s245 = sand.u32 %s130, 1
        %s246 = scalar_lea.sflag [#allocation3], %s245
        %s247 = sand.u32 %s130, 1
        %s248 = smul.addr %s247, 16
        %s249 = scalar_lea.vmem [#allocation2], %s248
        %p250 = pneg %p169
        %p251 = pneg %p166
        %s252 = sand.u32 %s156, 1
        %s253 = scalar_lea.sflag [#allocation5], %s252
        %s254 = sand.u32 %s156, 1
        %s255 = smul.addr %s254, 16
        %s256 = scalar_lea.vmem [#allocation4], %s255
        %p257 = scmp.lt.s32.totalorder %s23, 1
        %s258 = scalar_select %p257, %s23, 1
        %s259 = smul.addr %s258, 4
        %s260 = scalar_lea.vmem %s0, %s259
        %p261 = scmp.lt.s32.totalorder %s23, 1
        %s262 = scalar_select %p261, %s23, 1
        %s263 = smul.addr %s262, 2
        %s264 = smul.addr %s263, 8
        %s265 = scalar_lea.vmem %s1, %s264
        %p266 = scmp.lt.s32.totalorder %s23, 1
        %s267 = scalar_select %p266, %s23, 1
        %s268 = smul.addr %s267, 2
        %s269 = smul.addr %s268, 8
        %s270 = scalar_lea.vmem %s2, %s269
        %v271 = vld [vmem:[%s3] sm:$0xff]
        %v272 = vld [vmem:[%s3 + $0x8] sm:$0xff]
        %v273 = vld [vmem:[%s3 + $0x10] sm:$0xff]
        %v274 = vld [vmem:[%s3 + $0x18] sm:$0xff]
        %v275 = vld [vmem:[%s3 + $0x20] sm:$0xff]
        %v276 = vld [vmem:[%s3 + $0x28] sm:$0xff]
        %v277 = vld [vmem:[%s3 + $0x30] sm:$0xff]
        %v278 = vld [vmem:[%s3 + $0x38] sm:$0xff]
        %v279 = vld [vmem:[%s265] sm:$0xff]
        %v280 = vld [vmem:[%s265 + $0x8] sm:$0xff]
        %v281 = vld [vmem:[%s260] sm:$0xf]
        %v282 = vld [vmem:[%s270] sm:$0xff]
        %v283 = vld [vmem:[%s270 + $0x8] sm:$0xff]
        %vm284 = vcmask 1043456
        %v285 = vsel %vm284, %v281, 0.0
        %v286 = vlaneseq
        %v287 = vand.u32 %v286, 127
        %vm288 = vcmp.lt.s32.totalorder %v287, 0
        %v289 = vsub.s32 0, %v287
        %v290 = vsel %vm288, %v289, %v287
        %v291 = vshrl.u32 %v290, 7
        %v292 = vand.u32 %v290, 127
        %v293 = vsub.s32 0, %v292
        %v294 = vsel %vm288, %v293, %v292
        %vm295 = vcmp.ne.s32.totalorder %v294, 0
        %vm296 = vcmp.lt.s32.totalorder %v294, 0
        %vm297 = vmand %vm296, %vm295
        %v298 = vadd.s32 %v294, 128
        %v299 = vsel %vm297, %v298, %v294
        %300 = vrot.lane.b32.xlu0 %v279, 1
        %v301 = vpop.permute.xlu0 %300
        %302 = vrot.lane.b32.xlu0 %v280, 1
        %v303 = vpop.permute.xlu0 %302
        %vm304 = vcmp.ge.s32.totalorder %v299, 1
        %v305 = vsel %vm304, %v301, 0.0
        %v306 = vsel %vm304, %v303, 0.0
        %307 = vrot.lane.b32.xlu0 %v279, 127
        %v308 = vpop.permute.xlu0 %307
        %309 = vrot.lane.b32.xlu0 %v280, 127
        %v310 = vpop.permute.xlu0 %309
        %vm311 = vcmp.lt.s32.totalorder %v299, 127
        %v312 = vsel %vm311, %v308, 0.0
        %v313 = vsel %vm311, %v310, 0.0
        %314 = vrot.lane.b32.xlu0 %v285, 1
        %v315 = vpop.permute.xlu0 %314
        %v316 = vsel %vm304, %v315, 0.0
        %317 = vrot.lane.b32.xlu0 %v285, 127
        %v318 = vpop.permute.xlu0 %317
        %v319 = vsel %vm311, %v318, 0.0
        %v320 = vlaneseq
        %v321 = vshrl.u32 %v320, 7
        %v322 = vadd.s32 %v321, 8
        %v323 = vadd.s32 %v321, 16
        %v324 = vadd.s32 %v321, 24
        %v325 = vadd.s32 %v321, 32
        %v326 = vadd.s32 %v321, 40
        %v327 = vadd.s32 %v321, 48
        %vm328 = vcmp.eq.s32.totalorder %v321, 0
        %vm329 = vcmp.eq.s32.totalorder %v322, 0
        %vm330 = vcmp.eq.s32.totalorder %v323, 0
        %vm331 = vcmp.eq.s32.totalorder %v324, 0
        %vm332 = vcmp.eq.s32.totalorder %v325, 0
        %vm333 = vcmp.eq.s32.totalorder %v326, 0
        %vm334 = vcmp.eq.s32.totalorder %v327, 0
        %v335 = vsel %vm328, 1.0, 0.0
        %v336 = vsel %vm329, 1.0, 0.0
        %v337 = vsel %vm330, 1.0, 0.0
        %v338 = vsel %vm331, 1.0, 0.0
        %v339 = vsel %vm332, 1.0, 0.0
        %v340 = vsel %vm333, 1.0, 0.0
        %v341 = vsel %vm334, 1.0, 0.0
        %342 = vmatprep.subr.mxu0 0.0
        %343 = vmatpush1.msra.mxu0 %v305
        %344 = vmatprep.subr.mxu0 0.0
        %345 = vmatpush1.msra.mxu0 %v306
        %346 = vmatprep.subr.mxu0 0.0
        %347 = vmatpush1.msra.mxu0 %v279
        %348 = vmatprep.subr.mxu0 0.0
        %349 = vmatpush1.msra.mxu0 %v280
        %350 = vmatprep.subr.mxu0 0.0
        %351 = vmatpush1.msra.mxu0 %v312
        %352 = vmatprep.subr.mxu0 0.0
        %353 = vmatpush1.msra.mxu0 %v313
        %354 = vmatprep.subr.mxu0 0.0
        %355 = vmatpush1.msra.mxu0 %v316
        %356 = vmatprep.subr.mxu0 0.0
        %357 = vmatpush1.msra.mxu0 %v285
        %358 = vmatprep.subr.mxu0 0.0
        %359 = vmatpush1.msra.mxu0 %v319
        %360 = vmatprep.subr.mxu0 0.0
        %361 = vmatpush1.msra.mxu0 %v335
        %362 = vmatprep.subr.mxu0 0.0
        %363 = vmatpush1.msra.mxu0 %v336
        %364 = vmatprep.subr.mxu0 0.0
        %365 = vmatpush1.msra.mxu0 %v337
        %366 = vmatprep.subr.mxu0 0.0
        %367 = vmatpush1.msra.mxu0 %v338
        %368 = vmatprep.subr.mxu0 0.0
        %369 = vmatpush1.msra.mxu0 %v339
        %370 = vmatprep.subr.mxu0 0.0
        %371 = vmatpush1.msra.mxu0 %v340
        %372 = vmatprep.subr.mxu0 0.0
        %373 = vmatpush1.msra.mxu0 %v341
        %374 = vmatprep.subr.mxu0 0.0
        %375 = vmatpush1.msra.mxu0 0.0
        %376 = vmatprep.subr.mxu0 0.0
        %377 = vmatpush1.msra.mxu0 0.0
        %378 = vmatprep.subr.mxu0 0.0
        %379 = vmatpush1.msra.mxu0 0.0
        %380 = vmatprep.subr.mxu0 0.0
        %381 = vmatpush1.msra.mxu0 0.0
        %382 = vmatprep.subr.mxu0 0.0
        %383 = vmatpush1.msra.mxu0 0.0
        %384 = vmatprep.subr.mxu0 0.0
        %385 = vmatpush1.msra.mxu0 0.0
        %386 = vmatprep.subr.mxu0 0.0
        %387 = vmatpush1.msra.mxu0 0.0
        %388 = vmatprep.subr.mxu0 0.0
        %389 = vmatpush1.msra.mxu0 0.0
        %390 = vmatprep.subr.mxu0 0.0
        %391 = vmatpush1.msra.mxu0 0.0
        %392 = vmatprep.subr.mxu0 0.0
        %393 = vmatpush1.msra.mxu0 0.0
        %394 = vmatprep.subr.mxu0 0.0
        %395 = vmatpush1.msra.mxu0 0.0
        %396 = vmatprep.subr.mxu0 0.0
        %397 = vmatpush1.msra.mxu0 0.0
        %398 = vmatprep.subr.mxu0 0.0
        %399 = vmatpush1.msra.mxu0 0.0
        %400 = vmatprep.subr.mxu0 0.0
        %401 = vmatpush1.msra.mxu0 0.0
        %402 = vmatprep.subr.mxu0 0.0
        %403 = vmatpush1.msra.mxu0 0.0
        %404 = vmatprep.subr.mxu0 0.0
        %405 = vmatpush1.msra.mxu0 0.0
        %406 = vmatprep.mubr.f32.mxu0 0.0
        %407 = vmatmul.mubr.f32.gmra.mrb[0].mxu0 %v271
        %v408 = vpop.f32.mrb[0].mxu0
        %v409 = vadd.f32 0.0, %v408
        %v410 = vpop.f32.mrb[0].mxu0
        %411 = vmatprep.mubr.f32.mxu0 0.0
        %412 = vmatmul.mubr.f32.gmra.mrb[0].mxu0 %v272
        %v413 = vpop.f32.mrb[0].mxu0
        %v414 = vadd.f32 0.0, %v413
        %v415 = vpop.f32.mrb[0].mxu0
        %416 = vmatprep.mubr.f32.mxu0 0.0
        %417 = vmatmul.mubr.f32.gmra.mrb[0].mxu0 %v273
        %v418 = vpop.f32.mrb[0].mxu0
        %v419 = vadd.f32 0.0, %v418
        %v420 = vpop.f32.mrb[0].mxu0
        %421 = vmatprep.mubr.f32.mxu0 0.0
        %422 = vmatmul.mubr.f32.gmra.mrb[0].mxu0 %v274
        %v423 = vpop.f32.mrb[0].mxu0
        %v424 = vadd.f32 0.0, %v423
        %v425 = vpop.f32.mrb[0].mxu0
        %426 = vmatprep.mubr.f32.mxu0 0.0
        %427 = vmatmul.mubr.f32.gmra.mrb[0].mxu0 %v275
        %v428 = vpop.f32.mrb[0].mxu0
        %v429 = vadd.f32 0.0, %v428
        %v430 = vpop.f32.mrb[0].mxu0
        %431 = vmatprep.mubr.f32.mxu0 0.0
        %432 = vmatmul.mubr.f32.gmra.mrb[0].mxu0 %v276
        %v433 = vpop.f32.mrb[0].mxu0
        %v434 = vadd.f32 0.0, %v433
        %v435 = vpop.f32.mrb[0].mxu0
        %436 = vmatprep.mubr.f32.mxu0 0.0
        %437 = vmatmul.mubr.f32.gmra.mrb[0].mxu0 %v277
        %v438 = vpop.f32.mrb[0].mxu0
        %v439 = vadd.f32 0.0, %v438
        %v440 = vpop.f32.mrb[0].mxu0
        %441 = vmatprep.mubr.f32.mxu0 0.0
        %442 = vmatmul.mubr.f32.gmra.mrb[0].mxu0 %v278
        %v443 = vpop.f32.mrb[0].mxu0
        %v444 = vadd.f32 0.0, %v443
        %v445 = vpop.f32.mrb[0].mxu0
        %446 = vdwg.mxu0
        %v447 = vxor.u32 %v409, 2147483648
        %v448 = vxor.u32 %v414, 2147483648
        %v449 = vmul.f32 %v447, 1.442695
        %v450 = vpow.pop %v449
        %v451 = vmul.f32 %v448, 1.442695
        %v452 = vpow.pop %v451
        %v453 = vadd.f32 %v450, 1.0
        %v454 = vadd.f32 %v452, 1.0
        %v455 = vrcp.pop %v453
        %v456 = vmul.f32 1.0, %v455
        %v457 = vrcp.pop %v454
        %v458 = vmul.f32 1.0, %v457
        %v459 = vxor.u32 %v419, 2147483648
        %v460 = vxor.u32 %v424, 2147483648
        %v461 = vmul.f32 %v459, 1.442695
        %v462 = vpow.pop %v461
        %v463 = vmul.f32 %v460, 1.442695
        %v464 = vpow.pop %v463
        %v465 = vadd.f32 %v462, 1.0
        %v466 = vadd.f32 %v464, 1.0
        %v467 = vrcp.pop %v465
        %v468 = vmul.f32 1.0, %v467
        %v469 = vrcp.pop %v466
        %v470 = vmul.f32 1.0, %v469
        %v471 = vxor.u32 %v429, 2147483648
        %v472 = vxor.u32 %v434, 2147483648
        %v473 = vmul.f32 %v471, 1.442695
        %v474 = vpow.pop %v473
        %v475 = vmul.f32 %v472, 1.442695
        %v476 = vpow.pop %v475
        %v477 = vadd.f32 %v474, 1.0
        %v478 = vadd.f32 %v476, 1.0
        %v479 = vrcp.pop %v477
        %v480 = vmul.f32 1.0, %v479
        %v481 = vrcp.pop %v478
        %v482 = vmul.f32 1.0, %v481
        %v483 = vtanh.pop %v439
        %v484 = vtanh.pop %v444
        %v485 = vmul.f32 %v468, %v282
        %v486 = vmul.f32 %v470, %v283
        %v487 = vmul.f32 %v456, %v483
        %v488 = vmul.f32 %v458, %v484
        %v489 = vadd.f32 %v485, %v487
        %v490 = vadd.f32 %v486, %v488
        %v491 = vtanh.pop %v489
        %v492 = vtanh.pop %v490
        %v493 = vmul.f32 %v480, %v491
        %v494 = vmul.f32 %v482, %v492
        %495 = vst [vmem:[%s249] sm:$0xff] %v493
        %496 = vst [vmem:[%s249 + $0x8] sm:$0xff] %v494
        %497 = vst [vmem:[%s256] sm:$0xff] %v489
        %498 = vst [vmem:[%s256 + $0x8] sm:$0xff] %v490
        %s499 = sand.u32 %s130, 1
        %s500 = scalar_lea.sflag [#allocation3], %s499
        %s501 = sand.u32 %s130, 1
        %s502 = smul.addr %s501, 16
        %s503 = scalar_lea.vmem [#allocation2], %s502
        %s504 = sand.u32 %s156, 1
        %s505 = scalar_lea.sflag [#allocation5], %s504
        %s506 = sand.u32 %s156, 1
        %s507 = smul.addr %s506, 16
        %s508 = scalar_lea.vmem [#allocation4], %s507
        // Predicated region
        $region37: #{conv_1d_lstm_cell.1} parent=35 // pred_check
          %p509 = pneg %p140
        $region38: #{conv_1d_lstm_cell.1} parent=35 // pred_check_branch
          %511 = sbr.rel (%p509) target = $region40
        $region39: #{conv_1d_lstm_cell.1} parent=35 // pred_region
          %s513 = ssub.s32 256, 256
          %514 = vsyncadd %s500, %s513
          %s515 = smul.addr %s23, 2
          %s516 = smul.addr %s515, 128
          %s517 = scalar_lea.hbm %s4, %s516
          %s518 = sshll.u32 %s503, 4
          %s519 = int_to_ptr.vmem [resolvable:$true] %s518
          %524 = dma.vmem_to_hbm [thread:$0]  %s519, 256, %s517, %s500, 128, 128, 8
        $region40: #{conv_1d_lstm_cell.1} parent=35 // pred_fallthru
          _
        // Predicated region
        $region41: #{conv_1d_lstm_cell.1} parent=35 // pred_check
          %p525 = pneg %p166
        $region42: #{conv_1d_lstm_cell.1} parent=35 // pred_check_branch
          %527 = sbr.rel (%p525) target = $region44
        $region43: #{conv_1d_lstm_cell.1} parent=35 // pred_region
          %s529 = ssub.s32 256, 256
          %530 = vsyncadd %s505, %s529
          %s531 = smul.addr %s23, 2
          %s532 = smul.addr %s531, 128
          %s533 = scalar_lea.hbm %s5, %s532
          %s534 = sshll.u32 %s508, 4
          %s535 = int_to_ptr.vmem [resolvable:$true] %s534
          %540 = dma.vmem_to_hbm [thread:$0]  %s535, 256, %s533, %s505, 128, 128, 8
        $region44: #{conv_1d_lstm_cell.1} parent=35 // pred_fallthru
          _
      $region36: #{conv_1d_lstm_cell.1} parent=5 // pred_fallthru
        _
      %p541 = scmp.le.s32.totalorder 2, %s18
      // Predicated region
      $region45: #{conv_1d_lstm_cell.1} parent=5 // pred_check
        %p542 = pneg %p541
      $region46: #{conv_1d_lstm_cell.1} parent=5 // pred_check_branch
        %544 = sbr.rel (%p542) target = $region48
      $region47: #{conv_1d_lstm_cell.1} parent=5 // pred_region
        %s545 = ssub.s32 %s18, 2
        // Predicated region
        $region49: #{conv_1d_lstm_cell.1} parent=47 // pred_check
          %p546 = pneg %p146
        $region50: #{conv_1d_lstm_cell.1} parent=47 // pred_check_branch
          %548 = sbr.rel (%p546) target = $region52
        $region51: #{conv_1d_lstm_cell.1} parent=47 // pred_region
          %s549 = sand.u32 %s131, 1
          %s550 = scalar_lea.sflag [#allocation3], %s549
          %s551 = sand.u32 %s131, 1
          %s552 = smul.addr %s551, 16
          %s553 = scalar_lea.vmem [#allocation2], %s552
          %554 = dma.done %s550, 256
        $region52: #{conv_1d_lstm_cell.1} parent=47 // pred_fallthru
          _
        // Predicated region
        $region53: #{conv_1d_lstm_cell.1} parent=47 // pred_check
          %p555 = pneg %p172
        $region54: #{conv_1d_lstm_cell.1} parent=47 // pred_check_branch
          %557 = sbr.rel (%p555) target = $region56
        $region55: #{conv_1d_lstm_cell.1} parent=47 // pred_region
          %s558 = sand.u32 %s157, 1
          %s559 = scalar_lea.sflag [#allocation5], %s558
          %s560 = sand.u32 %s157, 1
          %s561 = smul.addr %s560, 16
          %s562 = scalar_lea.vmem [#allocation4], %s561
          %563 = dma.done %s559, 256
        $region56: #{conv_1d_lstm_cell.1} parent=47 // pred_fallthru
          _
      $region48: #{conv_1d_lstm_cell.1} parent=5 // pred_fallthru
        _
    $region6: #{conv_1d_lstm_cell.1} parent=1 // loop_footer
      %s22 = sadd.s32 1, %s18
    $region7: #{conv_1d_lstm_cell.1} parent=1 // loop_footer_branch
      %17 = sbr.rel target = $region3
    $region8: #{conv_1d_lstm_cell.1} parent=1 // loop_exit
      _
    %564 = vsyncpa [#allocation3], 1
    %s565 = scalar_lea.sflag [#allocation3], 1
    %566 = vsyncpa %s565, 1
    %567 = vsyncpa [#allocation5], 1
    %s568 = scalar_lea.sflag [#allocation5], 1
    %569 = vsyncpa %s568, 1

</llo_original>
